<compile_context>
chip_gen: v7x
topology: tpu7x:2x2x1
jax: 0.10.0
libtpu: 0.0.40
codegen_flags: <defaults>
</compile_context>

<pallas_src>
import functools

import jax
import jax.numpy as jnp
from jax.experimental import pallas as pl
from jax.experimental.pallas import tpu as pltpu


def _round_up(x: int, m: int) -> int:
    return ((x + m - 1) // m) * m


def _cdiv(a: int, b: int) -> int:
    return -(-a // b)


def _pad_feature(n: int) -> int:
    f = _round_up(n, 128)
    # v6e/v7x MXU tiles are 256 wide; round large feature dims up to 256.
    if f >= 1024 and f % 256 != 0:
        f = _round_up(f, 256)
    return f


def _vmem_capacity_bytes() -> int:
    try:
        return int(pltpu.get_tpu_info().vmem_capacity_bytes)
    except Exception:
        return 64 << 20  # conservative (v7x-sized) fallback


# --------------------------------------------------------------------------- #
# Kernels
# --------------------------------------------------------------------------- #
def _resid_linear_kernel_resident(x_ref, wT_ref, b_ref, o_ref):
    # Whole (padded) feature dim per tile; weight stays VMEM-resident.
    x = x_ref[...]                                        # (TB, F)
    z = jnp.dot(x, wT_ref[...],                           # (F, F) pre-transposed
                preferred_element_type=jnp.float32)       # f32 MXU accumulate
    z = z + b_ref[...] + x.astype(jnp.float32)            # bias + residual (f32)
    o_ref[...] = jnp.tanh(z).astype(o_ref.dtype)


def _resid_linear_kernel_ntiled(x_ref, wT_ref, b_ref, o_ref):
    # Weight tiled along the output (N) axis; x block (full K) is resident
    # across the inner N grid axis.
    tn = o_ref.shape[-1]
    j = pl.program_id(1)
    off = pl.multiple_of(j * tn, 128)                     # aligned lane offset
    x = x_ref[...]                                        # (TB, F)
    z = jnp.dot(x, wT_ref[...],                           # (F, TN)
                preferred_element_type=jnp.float32)       # (TB, TN) f32
    x_res = x_ref[:, pl.ds(off, tn)].astype(jnp.float32)  # residual slice
    z = z + b_ref[...] + x_res
    o_ref[...] = jnp.tanh(z).astype(o_ref.dtype)


# --------------------------------------------------------------------------- #
# Tiling plan (all trace-time Python)
# --------------------------------------------------------------------------- #
def _plan_tiles(B, F_pad, x_item, w_item, out_item, block_batch, weight_block_n):
    cap = _vmem_capacity_bytes()
    usable = min(int(cap * 0.7), 96 << 20)

    B8 = _round_up(max(B, 1), 8)

    # ---- weight path: resident (F,F) vs N-tiled (F,TN). Account for the
    #      default 2x input buffering Pallas applies even to invariant blocks.
    if weight_block_n is not None:
        assert weight_block_n % 128 == 0 and F_pad % weight_block_n == 0, \
            "weight_block_n must be a multiple of 128 dividing the padded dim"
        resident = False
        TN = weight_block_n
        w_alloc = 2 * F_pad * TN * w_item
    else:
        w_resident_bytes = 2 * F_pad * F_pad * w_item
        resident = w_resident_bytes <= usable // 3
        if resident:
            TN = F_pad
            w_alloc = w_resident_bytes
        else:
            TN = F_pad
            while 2 * F_pad * TN * w_item > usable // 3 and TN > 128:
                nxt = TN // 2
                if nxt % 128 == 0 and F_pad % nxt == 0:
                    TN = nxt
                else:
                    TN = 128
                    break
            w_alloc = 2 * F_pad * TN * w_item
    bias_alloc = 2 * TN * 4

    # ---- batch tile: as large as remaining VMEM allows, multiple of 8,
    #      padding-minimal, and >=2 tiles (when B permits) for v7x's 2 TCs.
    per_row = 2 * (F_pad * x_item + TN * out_item)        # dbl-buffered x + out
    budget = usable - w_alloc - bias_alloc - (2 << 20)
    if budget > per_row * 8:
        tb_vmem_cap = max(8, (budget // per_row) // 8 * 8)
    else:
        tb_vmem_cap = 8
    TB = min(_round_up(min(block_batch, B8), 8), tb_vmem_cap)
    min_tiles = 2 if B8 >= 16 else 1
    nt = max(_cdiv(B8, TB), min_tiles)
    TB = _round_up(_cdiv(B8, nt), 8)
    nt = _cdiv(B8, TB)
    B_pad = nt * TB

    alloc = (2 * TB * F_pad * x_item + 2 * TB * TN * out_item
             + w_alloc + bias_alloc + (2 << 20))
    vmem_limit = int(min(max(alloc, 4 << 20), int(cap * 0.75)))
    return TB, B_pad, TN, resident, vmem_limit


# --------------------------------------------------------------------------- #
# Public API
# --------------------------------------------------------------------------- #
def make_resid_linear_params(weight, bias, *, mxu_dtype=None):
    """One-time parameter prep (do this at module init, NOT per forward).

    Returns (W^T padded to (F_pad, F_pad), bias padded to (1, F_pad) f32).
    mxu_dtype=jnp.bfloat16 trades ~1e-3 relative precision for ~2x less HBM
    traffic and native-MXU throughput on v6e/v7x.
    """
    n_out, n_in = weight.shape
    assert n_in == n_out, "ResidLinear residual add requires n_in == n_out"
    F_pad = _pad_feature(n_in)
    w_dtype = mxu_dtype if mxu_dtype is not None else weight.dtype
    wT = jnp.pad(weight.T.astype(w_dtype), ((0, F_pad - n_in), (0, F_pad - n_out)))
    b = jnp.pad(bias.astype(jnp.float32), (0, F_pad - n_out)).reshape(1, F_pad)
    return wT, b


@functools.partial(jax.jit, static_argnames=("block_batch", "weight_block_n"))
def resid_linear_apply(x, wT_p, b_p, *, block_batch: int = 512,
                       weight_block_n=None):
    """x: (B, n) ; wT_p/b_p from make_resid_linear_params. Returns (B, n)."""
    B, n_in = x.shape
    F_pad = wT_p.shape[0]
    assert wT_p.shape == (F_pad, F_pad) and F_pad % 128 == 0 and F_pad >= n_in
    assert b_p.shape == (1, F_pad)

    out_dtype = x.dtype
    mxu_dtype = wT_p.dtype
    x_item = jnp.dtype(mxu_dtype).itemsize
    w_item = x_item
    out_item = jnp.dtype(out_dtype).itemsize

    TB, B_pad, TN, resident, vmem_limit = _plan_tiles(
        B, F_pad, x_item, w_item, out_item, block_batch, weight_block_n)

    # Zero padding is numerically safe: padded feature cols of x/W^T/b are 0,
    # so padded outputs are tanh(0)=0 and sliced away below.
    x_p = jnp.pad(x.astype(mxu_dtype), ((0, B_pad - B), (0, F_pad - n_in)))

    cost = pl.CostEstimate(
        flops=2 * B * n_in * n_in,
        transcendentals=B * n_in,
        bytes_accessed=(x_item * B * n_in + w_item * n_in * n_in
                        + 4 * n_in + out_item * B * n_in),
    )

    if resident:
        grid = (B_pad // TB,)
        out_p = pl.pallas_call(
            _resid_linear_kernel_resident,
            out_shape=jax.ShapeDtypeStruct((B_pad, F_pad), out_dtype),
            grid_spec=pltpu.PrefetchScalarGridSpec(
                num_scalar_prefetch=0,
                grid=grid,
                in_specs=[
                    pl.BlockSpec((TB, F_pad), lambda i: (i, 0)),      # x tile
                    pl.BlockSpec((F_pad, F_pad), lambda i: (0, 0)),   # resident W^T
                    pl.BlockSpec((1, F_pad), lambda i: (0, 0)),       # resident bias
                ],
                out_specs=pl.BlockSpec((TB, F_pad), lambda i: (i, 0)),
            ),
            compiler_params=pltpu.CompilerParams(
                dimension_semantics=("parallel",),
                vmem_limit_bytes=vmem_limit,
            ),
            cost_estimate=cost,
        )(x_p, wT_p, b_p)
    else:
        grid = (B_pad // TB, F_pad // TN)
        out_p = pl.pallas_call(
            _resid_linear_kernel_ntiled,
            out_shape=jax.ShapeDtypeStruct((B_pad, F_pad), out_dtype),
            grid_spec=pltpu.PrefetchScalarGridSpec(
                num_scalar_prefetch=0,
                grid=grid,
                in_specs=[
                    pl.BlockSpec((TB, F_pad), lambda i, j: (i, 0)),   # x (resident over j)
                    pl.BlockSpec((F_pad, TN), lambda i, j: (0, j)),   # W^T N-tile
                    pl.BlockSpec((1, TN), lambda i, j: (0, j)),       # bias N-tile
                ],
                out_specs=pl.BlockSpec((TB, TN), lambda i, j: (i, j)),
            ),
            compiler_params=pltpu.CompilerParams(
                dimension_semantics=("parallel", "parallel"),
                vmem_limit_bytes=vmem_limit,
            ),
            cost_estimate=cost,
        )(x_p, wT_p, b_p)

    return out_p[:B, :n_in]


def resid_linear(x, weight, bias, *, block_batch: int = 512,
                 mxu_dtype=None, weight_block_n=None):
    """Drop-in convenience wrapper (prefer make_resid_linear_params + apply)."""
    wT, b = make_resid_linear_params(weight, bias, mxu_dtype=mxu_dtype)
    return resid_linear_apply(x, wT, b, block_batch=block_batch,
                              weight_block_n=weight_block_n)


def _ref_resid_linear(x, weight, bias):
    return jnp.tanh(x @ weight.T + bias[None, :] + x)


if __name__ == "__main__":
    # ---- test 1: small module-sized shapes, exact f32 path ----
    key = jax.random.PRNGKey(0)
    batch, n_in = 8, 32
    kx, kw, kb = jax.random.split(key, 3)
    x = jax.random.normal(kx, (batch, n_in), dtype=jnp.float32)
    bound = 1.0 / (n_in ** 0.5)
    weight = jax.random.uniform(kw, (n_in, n_in), jnp.float32, -bound, bound)
    bias = jax.random.uniform(kb, (n_in,), jnp.float32, -bound, bound)

    wT, b = make_resid_linear_params(weight, bias)      # one-time prep
    out = jax.block_until_ready(resid_linear_apply(x, wT, b))
    ref = _ref_resid_linear(x, weight, bias)
    assert out.shape == (batch, n_in)
    assert jnp.allclose(out, ref, atol=1e-5, rtol=1e-5), "f32 resident path mismatch"

    # ---- test 2: exercise the N-tiled weight path (2 batch tiles x 2 N tiles) ----
    batch2, n2 = 16, 256
    k2x, k2w, k2b = jax.random.split(jax.random.PRNGKey(0), 3)
    x2 = jax.random.normal(k2x, (batch2, n2), dtype=jnp.float32)
    bnd2 = 1.0 / (n2 ** 0.5)
    w2 = jax.random.uniform(k2w, (n2, n2), jnp.float32, -bnd2, bnd2)
    bs2 = jax.random.uniform(k2b, (n2,), jnp.float32, -bnd2, bnd2)
    out2 = jax.block_until_ready(resid_linear(x2, w2, bs2, weight_block_n=128))
    ref2 = _ref_resid_linear(x2, w2, bs2)
    assert jnp.allclose(out2, ref2, atol=1e-4, rtol=1e-4), "N-tiled path mismatch"

    # ---- test 3: bf16 MXU-operand path (opt-in precision tradeoff) ----
    out3 = jax.block_until_ready(resid_linear(x2, w2, bs2, mxu_dtype=jnp.bfloat16))
    assert jnp.allclose(out3, ref2, atol=5e-2, rtol=5e-2), "bf16 path mismatch"

    print("KERNEL_OK")
</pallas_src>

<mosaic_0001>
module attributes {stable_mosaic.version = 11 : i64} {
  func.func @_resid_linear_kernel_resident(%arg0: i32, %arg1: memref<8x128xf32, #tpu.memory_space<vmem>>, %arg2: memref<128x128xf32, #tpu.memory_space<vmem>>, %arg3: memref<1x128xf32, #tpu.memory_space<vmem>>, %arg4: memref<8x128xf32, #tpu.memory_space<vmem>>) attributes {dimension_semantics = [#tpu.dimension_semantics<parallel>], iteration_bounds = array<i64: 1>, scalar_prefetch = 0 : i64, scratch_operands = 0 : i64, tpu.core_type = #tpu.core_type<tc>, window_params = [{transform_indices = @transform_0, window_bounds = array<i64: 8, 128>}, {pipeline_mode = #tpu.pipeline_mode<synchronous>, transform_indices = @transform_1, window_bounds = array<i64: 128, 128>}, {pipeline_mode = #tpu.pipeline_mode<synchronous>, transform_indices = @transform_2, window_bounds = array<i64: 1, 128>}, {transform_indices = @transform_3, window_bounds = array<i64: 8, 128>}]} {
    %c0 = arith.constant 0 : index
    %c0_0 = arith.constant 0 : index
    %0 = vector.load %arg1[%c0, %c0_0] : memref<8x128xf32, #tpu.memory_space<vmem>>, vector<8x128xf32>
    %c0_1 = arith.constant 0 : index
    %c0_2 = arith.constant 0 : index
    %1 = vector.load %arg2[%c0_1, %c0_2] : memref<128x128xf32, #tpu.memory_space<vmem>>, vector<128x128xf32>
    %cst = arith.constant dense<0.000000e+00> : vector<8x128xf32>
    %2 = tpu.matmul %0, %1, %cst {dimension_numbers = #tpu.dot_dimension_numbers<[1], [0], [0], [1], [0, 0, 1, 1], [], []>} : vector<8x128xf32>, vector<128x128xf32>, vector<8x128xf32> -> vector<8x128xf32>
    %c0_3 = arith.constant 0 : index
    %c0_4 = arith.constant 0 : index
    %3 = vector.load %arg3[%c0_3, %c0_4] : memref<1x128xf32, #tpu.memory_space<vmem>>, vector<1x128xf32>
    %4 = vector.broadcast %3 : vector<1x128xf32> to vector<8x128xf32>
    %5 = arith.addf %2, %4 : vector<8x128xf32>
    %6 = arith.addf %5, %0 : vector<8x128xf32>
    %7 = math.tanh %6 : vector<8x128xf32>
    %c0_5 = arith.constant 0 : index
    %c0_6 = arith.constant 0 : index
    %8 = vector.load %arg4[%c0_5, %c0_6] : memref<8x128xf32, #tpu.memory_space<vmem>>, vector<8x128xf32>
    tpu.vector_store %arg4[%c0_5, %c0_6], %7 {strides = array<i32>} : memref<8x128xf32, #tpu.memory_space<vmem>>, vector<8x128xf32>,
    return
  }
  func.func @transform_0(%arg0: i32) -> (i32, i32) {
    %c0_i32 = arith.constant 0 : i32
    %c0_i32_0 = arith.constant 0 : i32
    return %arg0, %c0_i32 : i32, i32
  }
  func.func @transform_1(%arg0: i32) -> (i32, i32) {
    %c0_i32 = arith.constant 0 : i32
    %c0_i32_0 = arith.constant 0 : i32
    %c0_i32_1 = arith.constant 0 : i32
    return %c0_i32, %c0_i32_0 : i32, i32
  }
  func.func @transform_2(%arg0: i32) -> (i32, i32) {
    %c0_i32 = arith.constant 0 : i32
    %c0_i32_0 = arith.constant 0 : i32
    %c0_i32_1 = arith.constant 0 : i32
    return %c0_i32, %c0_i32_0 : i32, i32
  }
  func.func @transform_3(%arg0: i32) -> (i32, i32) {
    %c0_i32 = arith.constant 0 : i32
    %c0_i32_0 = arith.constant 0 : i32
    return %arg0, %c0_i32 : i32, i32
  }
}

</mosaic_0001>

<llo_original>
// kernel: resid_linear_apply.1
$region0: #{resid_linear_apply.1}
  #allocation0 [shape = 'u32[]', space=smem, size = 0x4, offset = 0x4, fixed_abs, tag = 'smem constant byte address 0x4 - core index']
  #allocation1 [shape = 'u32[144,128]{1,0:T(1,128)}', space=vmem, size = 0x12000, scoped, tag = 'internal scratch']
  %s0 = inlined_call_operand.vmem [shape: f32[8,128], index: 0, kind: input, shape index: {}]
  %s1 = inlined_call_operand.hbm [shape: f32[128,128], index: 1, kind: input, shape index: {}]
  %s2 = inlined_call_operand.vmem [shape: f32[1,128], index: 2, kind: input, shape index: {}]
  %s3 = inlined_call_operand.hbm [shape: f32[8,128], index: 3, kind: output, shape index: {}]
  %s4 = sld [smem:[#allocation0]]
  $region26: #{resid_linear_apply.1} parent=0
    _
  %s6 = ssub.s32 1, %s4
  %s7 = scalar_select 0, %s6, %s4
  $region1: #{resid_linear_apply.1} parent=0
    #allocation2 [shape = 'u8[65536]{0}', space=vmem, size = 0x10000, scoped, tag = 'input window, operand 1, single buffered']
    #allocation3 [shape = 's32[1]{0}', space=sflag, size = 0x4, scoped, tag = 'scoped memory for resid_linear_apply.1']
    #allocation4 [shape = 's32[1]{0}', space=sflag, size = 0x4, scoped, tag = 'scoped memory for resid_linear_apply.1']
    #allocation5 [shape = 'u8[4096]{0}', space=vmem, size = 0x1000, scoped, tag = 'output window, operand 0, single buffered']
    %8 = vsyncpa [#allocation3], 0
    %9 = vsyncpa [#allocation4], 0
    // Predicated region
    $region2: #{resid_linear_apply.1} parent=1 // pred_check
      _
    $region3: #{resid_linear_apply.1} parent=1 // pred_check_branch
      %11 = sbr.rel (0) target = $region5
    $region4: #{resid_linear_apply.1} parent=1 // pred_region
      _
    $region5: #{resid_linear_apply.1} parent=1 // pred_fallthru
      _
    // Predicated region
    $region6: #{resid_linear_apply.1} parent=1 // pred_check
      _
    $region7: #{resid_linear_apply.1} parent=1 // pred_check_branch
      %13 = sbr.rel (0) target = $region9
    $region8: #{resid_linear_apply.1} parent=1 // pred_region
      %s15 = ssub.s32 2048, 2048
      %16 = vsyncadd [#allocation3], %s15
      %s17 = sshll.u32 [#allocation2], 4
      %s18 = int_to_ptr.vmem [resolvable:$true] %s17
      %23 = dma.hbm_to_vmem [thread:$0]  %s1, 2048, %s18, [#allocation3], 128, 128, 8
    $region9: #{resid_linear_apply.1} parent=1 // pred_fallthru
      _
    // Predicated region
    $region10: #{resid_linear_apply.1} parent=1 // pred_check
      _
    $region11: #{resid_linear_apply.1} parent=1 // pred_check_branch
      %25 = sbr.rel (0) target = $region13
    $region12: #{resid_linear_apply.1} parent=1 // pred_region
      _
    $region13: #{resid_linear_apply.1} parent=1 // pred_fallthru
      _
    // Predicated region
    $region14: #{resid_linear_apply.1} parent=1 // pred_check
      _
    $region15: #{resid_linear_apply.1} parent=1 // pred_check_branch
      %27 = sbr.rel (0) target = $region17
    $region16: #{resid_linear_apply.1} parent=1 // pred_region
      %28 = dma.done [#allocation3], 2048
    $region17: #{resid_linear_apply.1} parent=1 // pred_fallthru
      _
    %v29 = vld [vmem:[%s0] sm:$0xff]
    %v30 = vld [vmem:[#allocation2] sm:$0xff]
    %v31 = vld [vmem:[#allocation2 + $0x8] sm:$0xff]
    %v32 = vld [vmem:[#allocation2 + $0x10] sm:$0xff]
    %v33 = vld [vmem:[#allocation2 + $0x18] sm:$0xff]
    %v34 = vld [vmem:[#allocation2 + $0x20] sm:$0xff]
    %v35 = vld [vmem:[#allocation2 + $0x28] sm:$0xff]
    %v36 = vld [vmem:[#allocation2 + $0x30] sm:$0xff]
    %v37 = vld [vmem:[#allocation2 + $0x38] sm:$0xff]
    %v38 = vld [vmem:[#allocation2 + $0x40] sm:$0xff]
    %v39 = vld [vmem:[#allocation2 + $0x48] sm:$0xff]
    %v40 = vld [vmem:[#allocation2 + $0x50] sm:$0xff]
    %v41 = vld [vmem:[#allocation2 + $0x58] sm:$0xff]
    %v42 = vld [vmem:[#allocation2 + $0x60] sm:$0xff]
    %v43 = vld [vmem:[#allocation2 + $0x68] sm:$0xff]
    %v44 = vld [vmem:[#allocation2 + $0x70] sm:$0xff]
    %v45 = vld [vmem:[#allocation2 + $0x78] sm:$0xff]
    %v46 = vld [vmem:[%s2] sm:$0x1]
    %v48 = vlaneseq
    %v49 = vshrl.u32 %v48, 7
    %v50 = vsub.s32 0, %v49
    %v51 = vrot.slane %v46, %v50
    %53 = vmatprep.subr.mxu0 0.0
    %54 = vmatpush1.msra.mxu0 %v30
    %55 = vmatprep.subr.mxu0 0.0
    %56 = vmatpush1.msra.mxu0 %v31
    %57 = vmatprep.subr.mxu0 0.0
    %58 = vmatpush1.msra.mxu0 %v32
    %59 = vmatprep.subr.mxu0 0.0
    %60 = vmatpush1.msra.mxu0 %v33
    %61 = vmatprep.subr.mxu0 0.0
    %62 = vmatpush1.msra.mxu0 %v34
    %63 = vmatprep.subr.mxu0 0.0
    %64 = vmatpush1.msra.mxu0 %v35
    %65 = vmatprep.subr.mxu0 0.0
    %66 = vmatpush1.msra.mxu0 %v36
    %67 = vmatprep.subr.mxu0 0.0
    %68 = vmatpush1.msra.mxu0 %v37
    %69 = vmatprep.subr.mxu0 0.0
    %70 = vmatpush1.msra.mxu0 %v38
    %71 = vmatprep.subr.mxu0 0.0
    %72 = vmatpush1.msra.mxu0 %v39
    %73 = vmatprep.subr.mxu0 0.0
    %74 = vmatpush1.msra.mxu0 %v40
    %75 = vmatprep.subr.mxu0 0.0
    %76 = vmatpush1.msra.mxu0 %v41
    %77 = vmatprep.subr.mxu0 0.0
    %78 = vmatpush1.msra.mxu0 %v42
    %79 = vmatprep.subr.mxu0 0.0
    %80 = vmatpush1.msra.mxu0 %v43
    %81 = vmatprep.subr.mxu0 0.0
    %82 = vmatpush1.msra.mxu0 %v44
    %83 = vmatprep.subr.mxu0 0.0
    %84 = vmatpush1.msra.mxu0 %v45
    %85 = vmatprep.subr.mxu0 0.0
    %86 = vmatpush1.msra.mxu0 0.0
    %87 = vmatprep.subr.mxu0 0.0
    %88 = vmatpush1.msra.mxu0 0.0
    %89 = vmatprep.subr.mxu0 0.0
    %90 = vmatpush1.msra.mxu0 0.0
    %91 = vmatprep.subr.mxu0 0.0
    %92 = vmatpush1.msra.mxu0 0.0
    %93 = vmatprep.subr.mxu0 0.0
    %94 = vmatpush1.msra.mxu0 0.0
    %95 = vmatprep.subr.mxu0 0.0
    %96 = vmatpush1.msra.mxu0 0.0
    %97 = vmatprep.subr.mxu0 0.0
    %98 = vmatpush1.msra.mxu0 0.0
    %99 = vmatprep.subr.mxu0 0.0
    %100 = vmatpush1.msra.mxu0 0.0
    %101 = vmatprep.subr.mxu0 0.0
    %102 = vmatpush1.msra.mxu0 0.0
    %103 = vmatprep.subr.mxu0 0.0
    %104 = vmatpush1.msra.mxu0 0.0
    %105 = vmatprep.subr.mxu0 0.0
    %106 = vmatpush1.msra.mxu0 0.0
    %107 = vmatprep.subr.mxu0 0.0
    %108 = vmatpush1.msra.mxu0 0.0
    %109 = vmatprep.subr.mxu0 0.0
    %110 = vmatpush1.msra.mxu0 0.0
    %111 = vmatprep.subr.mxu0 0.0
    %112 = vmatpush1.msra.mxu0 0.0
    %113 = vmatprep.subr.mxu0 0.0
    %114 = vmatpush1.msra.mxu0 0.0
    %115 = vmatprep.subr.mxu0 0.0
    %116 = vmatpush1.msra.mxu0 0.0
    %117 = vmatprep.mubr.f32.mxu0 0.0
    %118 = vmatmul.mubr.f32.gmra.mrb[0].mxu0 %v29
    %v119 = vpop.f32.mrb[0].mxu0
    %v120 = vadd.f32 %v51, %v119
    %v121 = vpop.f32.mrb[0].mxu0
    %122 = vdwg.mxu0
    %v123 = vadd.f32 %v120, %v29
    %v124 = vtanh.pop %v123
    %125 = vst [vmem:[#allocation5] sm:$0xff] %v124
    // Predicated region
    $region18: #{resid_linear_apply.1} parent=1 // pred_check
      _
    $region19: #{resid_linear_apply.1} parent=1 // pred_check_branch
      %127 = sbr.rel (0) target = $region21
    $region20: #{resid_linear_apply.1} parent=1 // pred_region
      %s129 = ssub.s32 128, 128
      %130 = vsyncadd [#allocation4], %s129
      %s132 = sshll.u32 [#allocation5], 4
      %s133 = int_to_ptr.vmem [resolvable:$true] %s132
      %135 = dma.vmem_to_hbm [thread:$0]  %s133, 128, %s3, [#allocation4]
    $region21: #{resid_linear_apply.1} parent=1 // pred_fallthru
      _
    // Predicated region
    $region22: #{resid_linear_apply.1} parent=1 // pred_check
      _
    $region23: #{resid_linear_apply.1} parent=1 // pred_check_branch
      %137 = sbr.rel (0) target = $region25
    $region24: #{resid_linear_apply.1} parent=1 // pred_region
      %138 = dma.done [#allocation4], 128
    $region25: #{resid_linear_apply.1} parent=1 // pred_fallthru
      _
    %139 = vsyncpa [#allocation3], 1
    %140 = vsyncpa [#allocation4], 1

</llo_original>
